<compile_context>
chip_gen: v7x
topology: tpu7x:2x2x1
jax: 0.10.0
libtpu: 0.0.40
codegen_flags: <defaults>
</compile_context>

<pallas_src>
import math

import jax
import jax.numpy as jnp
from jax.experimental import pallas as pl
from jax.experimental.pallas import tpu as pltpu

_LANE = 128
_MAX_SLAB_WIDTH = 8192                  # lanes per slab row (multiple of 128)
_TARGET_BLOCK_BYTES = 4 * 1024 * 1024   # ~4 MiB/block -> ~16 MiB VMEM double-buffered
_VMEM_LIMIT_BYTES = 32 * 1024 * 1024    # explicit scoped-VMEM budget (safe on v5e/v6e/v7x)
_SMALL_INPUT_BYTES = 4 * 1024 * 1024    # below this the kernel is purely launch-bound
_MIN_GRID_STEPS = 4                     # want >= this many row blocks for DMA overlap


def _copy_kernel(x_ref, o_ref):
    # Identity copy of the current lane-dense (rb, W) block.
    o_ref[...] = x_ref[...]


def _sublane_multiple(dtype):
    # Dense sublane packing: f32 -> 8 rows/vreg, bf16 -> 16, int8/fp8 -> 32.
    itemsize = jnp.dtype(dtype).itemsize
    return max(8, 32 // max(1, itemsize))


def _pick_layout(total, itemsize, sub_m):
    """Choose (slab_width, rows, row_block, grid_rows) for a lane-dense copy.

    Prefers layouts that (a) give >= _MIN_GRID_STEPS row blocks so the copy
    stays pipelined, (b) have a row block that divides the row count (no
    masked tail store), and (c) use the widest slab width.  Returns None if
    `total` is not a multiple of 128 lanes.
    """
    cap = min(_MAX_SLAB_WIDTH, total)
    widths = [w for w in range(_LANE, cap + 1, _LANE) if total % w == 0]
    if not widths:
        return None

    best_key, best_layout = None, None
    for w in widths:
        rows = total // w
        # Row block: multiple of the sublane packing, ~_TARGET_BLOCK_BYTES,
        # clipped to the full row extent (full-extent blocks are always legal).
        rb = (_TARGET_BLOCK_BYTES // (w * itemsize)) // sub_m * sub_m
        rb = max(sub_m, rb)
        rb = min(rb, rows)
        # Prefer an rb that divides rows exactly -> no masked tail block.
        if rb < rows and rows % rb != 0:
            for cand in range(rb, 0, -sub_m):
                if rows % cand == 0:
                    rb = cand
                    break
        grid_rows = pl.cdiv(rows, rb)
        enough_steps = grid_rows >= _MIN_GRID_STEPS
        no_tail = rows % rb == 0
        key = (enough_steps, no_tail, w)
        if best_key is None or key > best_key:
            best_key, best_layout = key, (w, rows, rb, grid_rows)
    return best_layout


def flatten_pallas(x: jax.Array, *, force_kernel: bool = False) -> jax.Array:
    """Equivalent of torch `x.view(x.size(0), -1)` (row-major collapse, NCHW).

    Default path: zero-cost metadata reshape (no kernel, no HBM traffic) —
    strictly the fastest option on v5e/v6e/v7x.  `force_kernel=True` runs the
    lane-dense tiled-copy Pallas kernel instead (used for demonstration /
    when an explicit materializing copy of the flattened layout is wanted).
    """
    n = x.shape[0]
    k = math.prod(x.shape[1:]) if x.ndim > 1 else 1

    dtype = x.dtype
    itemsize = jnp.dtype(dtype).itemsize
    total = n * k

    # Fast path (default): flatten is pure metadata on a contiguous array.
    if not force_kernel:
        return x.reshape(n, k)

    # Launch-bound guard: tiny tensors gain nothing from a kernel.  (Skipped
    # here only because the caller explicitly forced the kernel path.)
    sub_m = _sublane_multiple(dtype)
    layout = _pick_layout(total, itemsize, sub_m)
    if layout is None:
        # Element stream isn't a multiple of 128 lanes: a lane-dense copy would
        # need masked stores, and flatten is free anyway — return the reshape.
        return x.reshape(n, k)

    w, rows, rb, grid_rows = layout

    # Pure layout plumbing: row-major collapse matches torch's contiguous .view.
    x_slab = x.reshape(rows, w)

    out_slab = pl.pallas_call(
        _copy_kernel,
        out_shape=jax.ShapeDtypeStruct((rows, w), dtype),
        grid=(grid_rows,),
        in_specs=[pl.BlockSpec((rb, w), lambda i: (i, 0))],
        out_specs=pl.BlockSpec((rb, w), lambda i: (i, 0)),
        compiler_params=pltpu.CompilerParams(
            dimension_semantics=("parallel",),
            vmem_limit_bytes=_VMEM_LIMIT_BYTES,
        ),
    )(x_slab)

    return out_slab.reshape(n, k)


if __name__ == "__main__":
    key = jax.random.PRNGKey(0)
    # Small NCHW input consistent with the module's usage: (batch=2, C=4, H=16, W=16)
    x = jax.random.normal(key, (2, 4, 16, 16), dtype=jnp.float32)

    # Reference: plain reshape (what torch .view does on a contiguous NCHW tensor).
    y_ref = x.reshape(x.shape[0], -1)

    # Default (recommended) path: zero-cost metadata reshape, no kernel launch.
    y_fast = jax.block_until_ready(flatten_pallas(x))

    # Forced Pallas path: exercises the lane-dense tiled-copy kernel once.
    y_kern = jax.block_until_ready(flatten_pallas(x, force_kernel=True))

    assert y_fast.shape == (2, 4 * 16 * 16), y_fast.shape
    assert y_kern.shape == (2, 4 * 16 * 16), y_kern.shape
    assert y_fast.dtype == x.dtype and y_kern.dtype == x.dtype
    assert bool(jnp.array_equal(y_fast, y_ref))
    assert bool(jnp.array_equal(y_kern, y_ref))

    print("KERNEL_OK")
</pallas_src>

<mosaic_0001>
module attributes {stable_mosaic.version = 11 : i64} {
  func.func @_copy_kernel(%arg0: i32, %arg1: memref<1x2048xf32, #tpu.memory_space<vmem>>, %arg2: memref<1x2048xf32, #tpu.memory_space<vmem>>) attributes {dimension_semantics = [#tpu.dimension_semantics<parallel>], iteration_bounds = array<i64: 1>, scalar_prefetch = 0 : i64, scratch_operands = 0 : i64, tpu.core_type = #tpu.core_type<tc>, window_params = [{transform_indices = @transform_0, window_bounds = array<i64: 1, 2048>}, {transform_indices = @transform_1, window_bounds = array<i64: 1, 2048>}]} {
    %c0 = arith.constant 0 : index
    %c0_0 = arith.constant 0 : index
    %0 = vector.load %arg1[%c0, %c0_0] : memref<1x2048xf32, #tpu.memory_space<vmem>>, vector<1x2048xf32>
    %c0_1 = arith.constant 0 : index
    %c0_2 = arith.constant 0 : index
    %1 = vector.load %arg2[%c0_1, %c0_2] : memref<1x2048xf32, #tpu.memory_space<vmem>>, vector<1x2048xf32>
    tpu.vector_store %arg2[%c0_1, %c0_2], %0 {strides = array<i32>} : memref<1x2048xf32, #tpu.memory_space<vmem>>, vector<1x2048xf32>,
    return
  }
  func.func @transform_0(%arg0: i32) -> (i32, i32) {
    %c0_i32 = arith.constant 0 : i32
    %c0_i32_0 = arith.constant 0 : i32
    return %arg0, %c0_i32 : i32, i32
  }
  func.func @transform_1(%arg0: i32) -> (i32, i32) {
    %c0_i32 = arith.constant 0 : i32
    %c0_i32_0 = arith.constant 0 : i32
    return %arg0, %c0_i32 : i32, i32
  }
}

</mosaic_0001>

<llo_original>
// kernel: tpu_custom_call.1
$region0: #{tpu_custom_call.1}
  #allocation0 [shape = 'u32[]', space=smem, size = 0x4, offset = 0x4, fixed_abs, tag = 'smem constant byte address 0x4 - core index']
  #allocation1 [shape = 'u32[144,128]{1,0:T(1,128)}', space=vmem, size = 0x12000, scoped, tag = 'internal scratch']
  %s0 = inlined_call_operand.hbm [shape: f32[1,2048], index: 0, kind: input, shape index: {}]
  %s1 = inlined_call_operand.hbm [shape: f32[1,2048], index: 1, kind: output, shape index: {}]
  %s2 = sld [smem:[#allocation0]]
  $region18: #{tpu_custom_call.1} parent=0
    _
  %s4 = ssub.s32 1, %s2
  %s5 = scalar_select 0, %s4, %s2
  $region1: #{tpu_custom_call.1} parent=0
    #allocation2 [shape = 'u8[8192]{0}', space=vmem, size = 0x2000, scoped, tag = 'input window, operand 0, single buffered']
    #allocation3 [shape = 's32[1]{0}', space=sflag, size = 0x4, scoped, tag = 'scoped memory for tpu_custom_call.1']
    #allocation4 [shape = 's32[1]{0}', space=sflag, size = 0x4, scoped, tag = 'scoped memory for tpu_custom_call.1']
    #allocation5 [shape = 'u8[8192]{0}', space=vmem, size = 0x2000, scoped, tag = 'output window, operand 0, single buffered']
    %6 = vsyncpa [#allocation3], 0
    %7 = vsyncpa [#allocation4], 0
    // Predicated region
    $region2: #{tpu_custom_call.1} parent=1 // pred_check
      _
    $region3: #{tpu_custom_call.1} parent=1 // pred_check_branch
      %9 = sbr.rel (0) target = $region5
    $region4: #{tpu_custom_call.1} parent=1 // pred_region
      %s11 = ssub.s32 256, 256
      %12 = vsyncadd [#allocation3], %s11
      %s14 = sshll.u32 [#allocation2], 4
      %s15 = int_to_ptr.vmem [resolvable:$true] %s14
      %17 = dma.hbm_to_vmem [thread:$0]  %s0, 256, %s15, [#allocation3]
    $region5: #{tpu_custom_call.1} parent=1 // pred_fallthru
      _
    // Predicated region
    $region6: #{tpu_custom_call.1} parent=1 // pred_check
      _
    $region7: #{tpu_custom_call.1} parent=1 // pred_check_branch
      %19 = sbr.rel (0) target = $region9
    $region8: #{tpu_custom_call.1} parent=1 // pred_region
      %20 = dma.done [#allocation3], 256
    $region9: #{tpu_custom_call.1} parent=1 // pred_fallthru
      _
    %v21 = vld [vmem:[#allocation2] sm:$0xff]
    %v22 = vld [vmem:[#allocation2 + $0x8] sm:$0xff]
    %23 = vst [vmem:[#allocation5] sm:$0xff] %v21
    %24 = vst [vmem:[#allocation5 + $0x8] sm:$0xff] %v22
    // Predicated region
    $region10: #{tpu_custom_call.1} parent=1 // pred_check
      _
    $region11: #{tpu_custom_call.1} parent=1 // pred_check_branch
      %26 = sbr.rel (0) target = $region13
    $region12: #{tpu_custom_call.1} parent=1 // pred_region
      %s28 = ssub.s32 256, 256
      %29 = vsyncadd [#allocation4], %s28
      %s31 = sshll.u32 [#allocation5], 4
      %s32 = int_to_ptr.vmem [resolvable:$true] %s31
      %34 = dma.vmem_to_hbm [thread:$0]  %s32, 256, %s1, [#allocation4]
    $region13: #{tpu_custom_call.1} parent=1 // pred_fallthru
      _
    // Predicated region
    $region14: #{tpu_custom_call.1} parent=1 // pred_check
      _
    $region15: #{tpu_custom_call.1} parent=1 // pred_check_branch
      %36 = sbr.rel (0) target = $region17
    $region16: #{tpu_custom_call.1} parent=1 // pred_region
      %37 = dma.done [#allocation4], 256
    $region17: #{tpu_custom_call.1} parent=1 // pred_fallthru
      _
    %38 = vsyncpa [#allocation3], 1
    %39 = vsyncpa [#allocation4], 1

</llo_original>
